<compile_context>
chip_gen: v7x
topology: tpu7x:2x2x1
jax: 0.10.0
libtpu: 0.0.40
codegen_flags: <defaults>
</compile_context>

<pallas_src>
import functools

import numpy as np
import jax
import jax.numpy as jnp
from jax.experimental import pallas as pl
from jax.experimental.pallas import tpu as pltpu


def _multi_local_atten_kernel(x_ref, wband_ref, wf_ref, o_ref, *, K):
    x = x_ref[...].astype(jnp.float32)                       # (TB, F)

    # K local 'same' convolutions as one banded bf16 matmul on the MXU (f32 accumulation).
    pre = jnp.dot(x.astype(jnp.bfloat16), wband_ref[...],
                  preferred_element_type=jnp.float32)        # (TB, K*F)

    # Gating in f32; sigmoid's transcendental goes to the EUP slot.
    atten = jax.nn.sigmoid(pre)                              # (TB, K*F)
    x_tiled = jnp.concatenate([x] * K, axis=-1)              # (TB, K*F), lane-aligned segments
    fused = (x_tiled * atten).astype(jnp.bfloat16)

    # Final Conv1d(F, F, K): ONE fused bf16 MXU matmul with f32 accumulation.
    y = jnp.dot(fused, wf_ref[...], preferred_element_type=jnp.float32)
    o_ref[...] = y.astype(o_ref.dtype)


def _build_banded_weight(local_weights, k_sizes, F):
    """(F, K*F) f32: block k is the banded matrix of Conv1d(1,1,k, padding=(k-1)//2, bias=False)."""
    K = len(k_sizes)
    wband = np.zeros((F, K * F), np.float32)
    for ki, (w, k) in enumerate(zip(local_weights, k_sizes)):
        w_host = np.asarray(w, np.float32)
        pad = (k - 1) // 2
        for t in range(k):                                   # torch Conv1d = cross-correlation
            d = t - pad
            for i in range(max(0, -d), min(F, F - d)):       # zero padding -> simply drop OOB taps
                wband[i + d, ki * F + i] += w_host[t]
    return wband


def multi_local_atten(x, local_weights, final_weight, k_sizes, *, block_b=512):
    """x: (B, F) f32; local_weights: list of (k,) f32; final_weight: (F, F, K) torch layout."""
    B, F = x.shape
    K = len(k_sizes)

    # Host-packed bf16 MXU weights; both are grid-invariant -> VMEM-resident across steps.
    wband = jnp.asarray(_build_banded_weight(local_weights, k_sizes, F), jnp.bfloat16)   # (F, K*F)
    wf = jnp.transpose(final_weight, (2, 1, 0)).reshape(K * F, F).astype(jnp.bfloat16)   # (K*F, F)

    # Batch tiling: big tiles (sublane multiple of 8), but keep >= 2 grid steps when the batch
    # allows it so both TensorCores of a v7x chip get work on the "parallel" axis.
    tb = min(block_b, 8 * ((B + 7) // 8))
    if B >= 16:
        tb = min(tb, 8 * (((B + 1) // 2 + 7) // 8))
    Bp = tb * ((B + tb - 1) // tb)
    x_in = jnp.pad(x, ((0, Bp - B), (0, 0))) if Bp != B else x
    num_b = Bp // tb

    # VMEM budget: double-buffered x/out tiles + resident bf16 weights (double-buffer counted)
    # + in-kernel temporaries (x f32+bf16, pre/atten/x_tiled f32, fused bf16).
    tile_bytes = tb * F * 4
    temp_bytes = tb * F * (6 + 14 * K)
    weight_bytes = 2 * 2 * (K * F * F * 2)
    vmem_est = 2 * 2 * tile_bytes + weight_bytes + temp_bytes + (2 << 20)
    cp = {"dimension_semantics": ("parallel",)}              # shard batch tiles across TCs
    if vmem_est > (32 << 20):
        cp["vmem_limit_bytes"] = min(vmem_est, 56 << 20)     # headroom under v7x 64 MiB physical

    kernel = functools.partial(_multi_local_atten_kernel, K=K)
    y = pl.pallas_call(
        kernel,
        out_shape=jax.ShapeDtypeStruct((Bp, F), x.dtype),
        grid=(num_b,),
        in_specs=[
            pl.BlockSpec((tb, F), lambda i: (i, 0)),         # x tile (pipelined over batch)
            pl.BlockSpec((F, K * F), lambda i: (0, 0)),      # banded local-conv weight (resident)
            pl.BlockSpec((K * F, F), lambda i: (0, 0)),      # packed final-conv weight (resident)
        ],
        out_specs=pl.BlockSpec((tb, F), lambda i: (i, 0)),
        compiler_params=pltpu.CompilerParams(**cp),
    )(x_in, wband, wf)
    return y[:B] if Bp != B else y


def _reference(x, local_weights, final_weight, k_sizes):
    B, F = x.shape
    outs = []
    for w, k in zip(local_weights, k_sizes):
        pad = (k - 1) // 2
        xp = jnp.pad(x, ((0, 0), (pad, pad)))
        acc = jnp.zeros_like(x)
        for t in range(k):
            acc = acc + w[t] * xp[:, t:t + F]
        outs.append(x * jax.nn.sigmoid(acc))
    stacked = jnp.stack(outs, axis=2)                        # (B, F, K)
    return jnp.einsum('bck,ock->bo', stacked, final_weight)


if __name__ == "__main__":
    key = jax.random.PRNGKey(0)
    B, F = 64, 128                     # batch, in_feat (F sits on the 128-lane axis)
    k_sizes = [3, 5, 7]                # odd kernel sizes (required for 'same' output length)
    K = len(k_sizes)

    keys = jax.random.split(key, 2 + K)
    x = jax.random.normal(keys[0], (B, F), jnp.float32)

    # LocalAtten1D conv: Conv1d(1,1,k,bias=False), kaiming_normal(fan_out, relu) -> std=sqrt(2/k)
    local_weights = [((2.0 / k) ** 0.5) * jax.random.normal(keys[1 + i], (k,), jnp.float32)
                     for i, k in enumerate(k_sizes)]

    # Final Conv1d(F, F, K, bias=False) weight, torch layout (out, in, K)
    bound = 1.0 / (F * K) ** 0.5
    wf = bound * jax.random.normal(keys[-1], (F, F, K), jnp.float32)

    y = multi_local_atten(x, local_weights, wf, k_sizes)
    jax.block_until_ready(y)

    y_ref = _reference(x, local_weights, wf, k_sizes)
    assert y.shape == (B, F)
    # bf16 MXU operands (banded conv + final dot, f32 accumulation) -> loosened tolerance
    assert jnp.allclose(y, y_ref, rtol=2e-2, atol=2e-2), "mismatch vs reference"
    print("KERNEL_OK")
</pallas_src>

<mosaic_0001>
module attributes {stable_mosaic.version = 11 : i64} {
  func.func @_multi_local_atten_kernel(%arg0: i32, %arg1: memref<32x128xf32, #tpu.memory_space<vmem>>, %arg2: memref<128x384xbf16, #tpu.memory_space<vmem>>, %arg3: memref<384x128xbf16, #tpu.memory_space<vmem>>, %arg4: memref<32x128xf32, #tpu.memory_space<vmem>>) attributes {dimension_semantics = [#tpu.dimension_semantics<parallel>], iteration_bounds = array<i64: 2>, scalar_prefetch = 0 : i64, scratch_operands = 0 : i64, tpu.core_type = #tpu.core_type<tc>, window_params = [{transform_indices = @transform_0, window_bounds = array<i64: 32, 128>}, {pipeline_mode = #tpu.pipeline_mode<synchronous>, transform_indices = @transform_1, window_bounds = array<i64: 128, 384>}, {pipeline_mode = #tpu.pipeline_mode<synchronous>, transform_indices = @transform_2, window_bounds = array<i64: 384, 128>}, {transform_indices = @transform_3, window_bounds = array<i64: 32, 128>}]} {
    %c0 = arith.constant 0 : index
    %c0_0 = arith.constant 0 : index
    %0 = vector.load %arg1[%c0, %c0_0] : memref<32x128xf32, #tpu.memory_space<vmem>>, vector<32x128xf32>
    %1 = arith.truncf %0 : vector<32x128xf32> to vector<32x128xbf16>
    %c0_1 = arith.constant 0 : index
    %c0_2 = arith.constant 0 : index
    %2 = vector.load %arg2[%c0_1, %c0_2] : memref<128x384xbf16, #tpu.memory_space<vmem>>, vector<128x384xbf16>
    %cst = arith.constant dense<0.000000e+00> : vector<32x384xf32>
    %3 = tpu.matmul %1, %2, %cst {dimension_numbers = #tpu.dot_dimension_numbers<[1], [0], [0], [1], [0, 0, 1, 1], [], []>} : vector<32x128xbf16>, vector<128x384xbf16>, vector<32x384xf32> -> vector<32x384xf32>
    %4 = arith.negf %3 : vector<32x384xf32>
    %5 = math.exp %4 : vector<32x384xf32>
    %cst_3 = arith.constant 1.000000e+00 : f32
    %6 = vector.broadcast %cst_3 : f32 to vector<32x384xf32>
    %7 = arith.addf %6, %5 : vector<32x384xf32>
    %8 = arith.divf %6, %7 : vector<32x384xf32>
    %9 = tpu.concatenate %0, %0, %0 in 1 : vector<32x128xf32>, vector<32x128xf32>, vector<32x128xf32> -> vector<32x384xf32>
    %10 = arith.mulf %9, %8 : vector<32x384xf32>
    %11 = arith.truncf %10 : vector<32x384xf32> to vector<32x384xbf16>
    %c0_4 = arith.constant 0 : index
    %c0_5 = arith.constant 0 : index
    %12 = vector.load %arg3[%c0_4, %c0_5] : memref<384x128xbf16, #tpu.memory_space<vmem>>, vector<384x128xbf16>
    %cst_6 = arith.constant dense<0.000000e+00> : vector<32x128xf32>
    %13 = tpu.matmul %11, %12, %cst_6 {dimension_numbers = #tpu.dot_dimension_numbers<[1], [0], [0], [1], [0, 0, 1, 1], [], []>} : vector<32x384xbf16>, vector<384x128xbf16>, vector<32x128xf32> -> vector<32x128xf32>
    %c0_7 = arith.constant 0 : index
    %c0_8 = arith.constant 0 : index
    %14 = vector.load %arg4[%c0_7, %c0_8] : memref<32x128xf32, #tpu.memory_space<vmem>>, vector<32x128xf32>
    tpu.vector_store %arg4[%c0_7, %c0_8], %13 {strides = array<i32>} : memref<32x128xf32, #tpu.memory_space<vmem>>, vector<32x128xf32>,
    return
  }
  func.func @transform_0(%arg0: i32) -> (i32, i32) {
    %c0_i32 = arith.constant 0 : i32
    %c0_i32_0 = arith.constant 0 : i32
    return %arg0, %c0_i32 : i32, i32
  }
  func.func @transform_1(%arg0: i32) -> (i32, i32) {
    %c0_i32 = arith.constant 0 : i32
    %c0_i32_0 = arith.constant 0 : i32
    %c0_i32_1 = arith.constant 0 : i32
    return %c0_i32, %c0_i32_0 : i32, i32
  }
  func.func @transform_2(%arg0: i32) -> (i32, i32) {
    %c0_i32 = arith.constant 0 : i32
    %c0_i32_0 = arith.constant 0 : i32
    %c0_i32_1 = arith.constant 0 : i32
    return %c0_i32, %c0_i32_0 : i32, i32
  }
  func.func @transform_3(%arg0: i32) -> (i32, i32) {
    %c0_i32 = arith.constant 0 : i32
    %c0_i32_0 = arith.constant 0 : i32
    return %arg0, %c0_i32 : i32, i32
  }
}

</mosaic_0001>

<llo_original>
// kernel: tpu_custom_call.1
$region0: #{tpu_custom_call.1}
  #allocation0 [shape = 'u32[]', space=smem, size = 0x4, offset = 0x4, fixed_abs, tag = 'smem constant byte address 0x4 - core index']
  #allocation1 [shape = 'u32[144,128]{1,0:T(1,128)}', space=vmem, size = 0x12000, scoped, tag = 'internal scratch']
  %s0 = inlined_call_operand.hbm [shape: f32[64,128], index: 0, kind: input, shape index: {}]
  %s1 = inlined_call_operand.hbm [shape: bf16[128,384], index: 1, kind: input, shape index: {}]
  %s2 = inlined_call_operand.hbm [shape: bf16[384,128], index: 2, kind: input, shape index: {}]
  %s3 = inlined_call_operand.hbm [shape: f32[64,128], index: 3, kind: output, shape index: {}]
  %s4 = sld [smem:[#allocation0]]
  $region57: #{tpu_custom_call.1} parent=0
    _
  %s6 = ssub.s32 1, %s4
  %s7 = scalar_select 0, %s6, %s4
  $region1: #{tpu_custom_call.1} parent=0
    #allocation2 [shape = 'u8[32768]{0}', space=vmem, size = 0x8000, scoped, tag = 'input window, operand 0']
    #allocation3 [shape = 's32[2]{0}', space=sflag, size = 0x8, scoped, tag = 'scoped memory for tpu_custom_call.1']
    #allocation4 [shape = 's32[2]{0}', space=sflag, size = 0x8, scoped, tag = 'scoped memory for tpu_custom_call.1']
    #allocation5 [shape = 'u8[98304]{0}', space=vmem, size = 0x18000, scoped, tag = 'input window, operand 1, single buffered']
    #allocation6 [shape = 's32[1]{0}', space=sflag, size = 0x4, scoped, tag = 'scoped memory for tpu_custom_call.1']
    #allocation7 [shape = 'u8[98304]{0}', space=vmem, size = 0x18000, scoped, tag = 'input window, operand 2, single buffered']
    #allocation8 [shape = 'u8[32768]{0}', space=vmem, size = 0x8000, scoped, tag = 'output window, operand 0']
    %8 = vsyncpa [#allocation3], 0
    %s9 = scalar_lea.sflag [#allocation3], 1
    %10 = vsyncpa %s9, 0
    %11 = vsyncpa [#allocation6], 0
    %12 = vsyncpa [#allocation4], 0
    %s13 = scalar_lea.sflag [#allocation4], 1
    %14 = vsyncpa %s13, 0
    loop: start=0, step=1, limit=4
    $region2: #{tpu_custom_call.1} parent=1 // loop_pre_header
      _
    $region3: #{tpu_custom_call.1} parent=1 // loop_header
      %s16 = sphi 0, %s20
      %p17 = scmp.ge.s32.totalorder %s16, 4
      %s26 = sphi 0, %s28
      %s29 = sphi 0, %s26
      %s30 = sphi 0, %s29
      %s46 = sphi 0, %s30
      %s50 = sphi 0, %s50
      %s52 = sphi 0, %s50
      %s53 = sphi 0, %s52
      %s67 = sphi 0, %s53
      %s71 = sphi 0, %s71
      %s73 = sphi 0, %s71
      %s74 = sphi 0, %s73
      %s88 = sphi 0, %s74
      %s94 = sphi 0, %s96
      %s97 = sphi 0, %s94
      %s98 = sphi 0, %s97
      %s114 = sphi 0, %s98
    $region4: #{tpu_custom_call.1} parent=1 // loop_header_branch
      %19 = sbr.rel (%p17) target = $region8
    $region5: #{tpu_custom_call.1} parent=1 // loop_body
      %s21 = ssub.s32 %s16, 1
      %s22 = ssub.s32 %s16, 2
      %s23 = sadd.s32 %s16, 1
      %s24 = ssub.s32 %s16, %s23
      %p25 = scmp.eq.s32.totalorder %s24, 0
      %s27 = sadd.s32 %s26, 1
      %s28 = scalar_select %p25, %s26, %s27
      %p31 = pneg %p25
      %p32 = scmp.eq.s32.totalorder %s16, 1
      %p33 = por %p31, %p32
      %p34 = scmp.ne.s32.totalorder %s26, %s29
      %p35 = scmp.eq.s32.totalorder %s16, 0
      %p36 = por %p34, %p35
      %p37 = scmp.ne.s32.totalorder %s26, %s29
      %p38 = scmp.eq.s32.totalorder %s21, 1
      %p39 = por %p37, %p38
      %p40 = scmp.ne.s32.totalorder %s29, %s30
      %p41 = scmp.eq.s32.totalorder %s21, 0
      %p42 = por %p40, %p41
      %p43 = scmp.ne.s32.totalorder %s29, %s30
      %p44 = scmp.eq.s32.totalorder %s22, 1
      %p45 = por %p43, %p44
      %p47 = scmp.ne.s32.totalorder %s30, %s46
      %p48 = scmp.eq.s32.totalorder %s22, 0
      %p49 = por %p47, %p48
      %s51 = sadd.s32 %s50, 1
      %p54 = scmp.eq.s32.totalorder %s16, 1
      %p55 = scmp.ne.s32.totalorder %s50, %s52
      %p56 = scmp.eq.s32.totalorder %s16, 0
      %p57 = por %p55, %p56
      %p58 = scmp.ne.s32.totalorder %s50, %s52
      %p59 = scmp.eq.s32.totalorder %s21, 1
      %p60 = por %p58, %p59
      %p61 = scmp.ne.s32.totalorder %s52, %s53
      %p62 = scmp.eq.s32.totalorder %s21, 0
      %p63 = por %p61, %p62
      %p64 = scmp.ne.s32.totalorder %s52, %s53
      %p65 = scmp.eq.s32.totalorder %s22, 1
      %p66 = por %p64, %p65
      %p68 = scmp.ne.s32.totalorder %s53, %s67
      %p69 = scmp.eq.s32.totalorder %s22, 0
      %p70 = por %p68, %p69
      %s72 = sadd.s32 %s71, 1
      %p75 = scmp.eq.s32.totalorder %s16, 1
      %p76 = scmp.ne.s32.totalorder %s71, %s73
      %p77 = scmp.eq.s32.totalorder %s16, 0
      %p78 = por %p76, %p77
      %p79 = scmp.ne.s32.totalorder %s71, %s73
      %p80 = scmp.eq.s32.totalorder %s21, 1
      %p81 = por %p79, %p80
      %p82 = scmp.ne.s32.totalorder %s73, %s74
      %p83 = scmp.eq.s32.totalorder %s21, 0
      %p84 = por %p82, %p83
      %p85 = scmp.ne.s32.totalorder %s73, %s74
      %p86 = scmp.eq.s32.totalorder %s22, 1
      %p87 = por %p85, %p86
      %p89 = scmp.ne.s32.totalorder %s74, %s88
      %p90 = scmp.eq.s32.totalorder %s22, 0
      %p91 = por %p89, %p90
      %s92 = ssub.s32 %s16, %s23
      %p93 = scmp.eq.s32.totalorder %s92, 0
      %s95 = sadd.s32 %s94, 1
      %s96 = scalar_select %p93, %s94, %s95
      %p99 = pneg %p93
      %p100 = scmp.eq.s32.totalorder %s16, 1
      %p101 = por %p99, %p100
      %p102 = scmp.ne.s32.totalorder %s94, %s97
      %p103 = scmp.eq.s32.totalorder %s16, 0
      %p104 = por %p102, %p103
      %p105 = scmp.ne.s32.totalorder %s94, %s97
      %p106 = scmp.eq.s32.totalorder %s21, 1
      %p107 = por %p105, %p106
      %p108 = scmp.ne.s32.totalorder %s97, %s98
      %p109 = scmp.eq.s32.totalorder %s21, 0
      %p110 = por %p108, %p109
      %p111 = scmp.ne.s32.totalorder %s97, %s98
      %p112 = scmp.eq.s32.totalorder %s22, 1
      %p113 = por %p111, %p112
      %p115 = scmp.ne.s32.totalorder %s98, %s114
      %p116 = scmp.eq.s32.totalorder %s22, 0
      %p117 = por %p115, %p116
      %p118 = scmp.le.s32.totalorder 1, %s16
      %p119 = scmp.lt.s32.totalorder %s16, 3
      %p120 = pnand %p118, %p119
      %p121 = pneg %p120
      // Predicated region
      $region9: #{tpu_custom_call.1} parent=5 // pred_check
        _
      $region10: #{tpu_custom_call.1} parent=5 // pred_check_branch
        %123 = sbr.rel (%p120) target = $region12
      $region11: #{tpu_custom_call.1} parent=5 // pred_region
        %s124 = ssub.s32 %s16, 1
        // Predicated region
        $region13: #{tpu_custom_call.1} parent=11 // pred_check
          %p125 = pneg %p63
        $region14: #{tpu_custom_call.1} parent=11 // pred_check_branch
          %127 = sbr.rel (%p125) target = $region16
        $region15: #{tpu_custom_call.1} parent=11 // pred_region
          %s129 = ssub.s32 3072, 3072
          %130 = vsyncadd [#allocation6], %s129
          %s131 = sshll.u32 [#allocation5], 4
          %s132 = int_to_ptr.vmem [resolvable:$true] %s131
          %137 = dma.hbm_to_vmem [thread:$0]  %s1, 3072, %s132, [#allocation6], 192, 192, 12
        $region16: #{tpu_custom_call.1} parent=11 // pred_fallthru
          _
        // Predicated region
        $region17: #{tpu_custom_call.1} parent=11 // pred_check
          %p138 = pneg %p84
        $region18: #{tpu_custom_call.1} parent=11 // pred_check_branch
          %140 = sbr.rel (%p138) target = $region20
        $region19: #{tpu_custom_call.1} parent=11 // pred_region
          %s142 = ssub.s32 3072, 3072
          %143 = vsyncadd [#allocation6], %s142
          %s144 = sshll.u32 [#allocation7], 4
          %s145 = int_to_ptr.vmem [resolvable:$true] %s144
          %150 = dma.hbm_to_vmem [thread:$0]  %s2, 3072, %s145, [#allocation6], 64, 64, 4
        $region20: #{tpu_custom_call.1} parent=11 // pred_fallthru
          _
      $region12: #{tpu_custom_call.1} parent=5 // pred_fallthru
        _
      %p151 = scmp.lt.s32.totalorder %s16, 2
      // Predicated region
      $region21: #{tpu_custom_call.1} parent=5 // pred_check
        %p152 = pneg %p151
      $region22: #{tpu_custom_call.1} parent=5 // pred_check_branch
        %154 = sbr.rel (%p152) target = $region24
      $region23: #{tpu_custom_call.1} parent=5 // pred_region
        // Predicated region
        $region25: #{tpu_custom_call.1} parent=23 // pred_check
          %p155 = pneg %p36
        $region26: #{tpu_custom_call.1} parent=23 // pred_check_branch
          %157 = sbr.rel (%p155) target = $region28
        $region27: #{tpu_custom_call.1} parent=23 // pred_region
          %s158 = sand.u32 %s26, 1
          %s159 = scalar_lea.sflag [#allocation3], %s158
          %s160 = sand.u32 %s26, 1
          %s161 = smul.addr %s160, 32
          %s162 = scalar_lea.vmem [#allocation2], %s161
          %s163 = smul.u32 4, %s16
          %s165 = ssub.s32 512, 512
          %166 = vsyncadd %s159, %s165
          %s167 = smul.addr %s163, 128
          %s168 = scalar_lea.hbm %s0, %s167
          %s169 = sshll.u32 %s162, 4
          %s170 = int_to_ptr.vmem [resolvable:$true] %s169
          %175 = dma.hbm_to_vmem [thread:$0]  %s168, 512, %s170, %s159, 128, 128, 8
        $region28: #{tpu_custom_call.1} parent=23 // pred_fallthru
          _
      $region24: #{tpu_custom_call.1} parent=5 // pred_fallthru
        _
      %p176 = scmp.le.s32.totalorder 1, %s16
      %p177 = scmp.lt.s32.totalorder %s16, 3
      %p178 = pnand %p176, %p177
      %p179 = pneg %p178
      // Predicated region
      $region29: #{tpu_custom_call.1} parent=5 // pred_check
        _
      $region30: #{tpu_custom_call.1} parent=5 // pred_check_branch
        %181 = sbr.rel (%p178) target = $region32
      $region31: #{tpu_custom_call.1} parent=5 // pred_region
        %s182 = ssub.s32 %s16, 1
        %s183 = sand.u32 %s29, 1
        %s184 = scalar_lea.sflag [#allocation3], %s183
        %s185 = sand.u32 %s29, 1
        %s186 = smul.addr %s185, 32
        %s187 = scalar_lea.vmem [#allocation2], %s186
        // Predicated region
        $region33: #{tpu_custom_call.1} parent=31 // pred_check
          %p188 = pneg %p42
        $region34: #{tpu_custom_call.1} parent=31 // pred_check_branch
          %190 = sbr.rel (%p188) target = $region36
        $region35: #{tpu_custom_call.1} parent=31 // pred_region
          %191 = dma.done %s184, 512
        $region36: #{tpu_custom_call.1} parent=31 // pred_fallthru
          _
        // Predicated region
        $region37: #{tpu_custom_call.1} parent=31 // pred_check
          %p192 = pneg %p63
        $region38: #{tpu_custom_call.1} parent=31 // pred_check_branch
          %194 = sbr.rel (%p192) target = $region40
        $region39: #{tpu_custom_call.1} parent=31 // pred_region
          %195 = dma.done [#allocation6], 3072
        $region40: #{tpu_custom_call.1} parent=31 // pred_fallthru
          _
        // Predicated region
        $region41: #{tpu_custom_call.1} parent=31 // pred_check
          %p196 = pneg %p84
        $region42: #{tpu_custom_call.1} parent=31 // pred_check_branch
          %198 = sbr.rel (%p196) target = $region44
        $region43: #{tpu_custom_call.1} parent=31 // pred_region
          %199 = dma.done [#allocation6], 3072
        $region44: #{tpu_custom_call.1} parent=31 // pred_fallthru
          _
        %s200 = sand.u32 %s29, 1
        %s201 = scalar_lea.sflag [#allocation3], %s200
        %s202 = sand.u32 %s29, 1
        %s203 = smul.addr %s202, 32
        %s204 = scalar_lea.vmem [#allocation2], %s203
        %p205 = pneg %p42
        %p206 = pneg %p39
        %p207 = pneg %p63
        %p208 = pneg %p60
        %p209 = pneg %p84
        %p210 = pneg %p81
        %p211 = pneg %p110
        %p212 = pneg %p107
        %s213 = sand.u32 %s97, 1
        %s214 = scalar_lea.sflag [#allocation4], %s213
        %s215 = sand.u32 %s97, 1
        %s216 = smul.addr %s215, 32
        %s217 = scalar_lea.vmem [#allocation8], %s216
        %s218 = smul.u32 4, %s21
        %s219 = smul.u32 4, %s21
        %v221 = vld [vmem:[%s187] sm:$0xff]
        %v222 = vld [vmem:[%s187 + $0x8] sm:$0xff]
        %v223 = vld [vmem:[%s187 + $0x10] sm:$0xff]
        %v224 = vld [vmem:[%s187 + $0x18] sm:$0xff]
        %v225 = vpack.c.bf16 %v222, %v221
        %v226 = vpack.c.bf16 %v224, %v223
        %v227 = vld [vmem:[#allocation5] sm:$0xff]
        %v228 = vld [vmem:[#allocation5 + $0x8] sm:$0xf]
        %v229 = vld [vmem:[#allocation5 + $0xc] sm:$0xff]
        %v230 = vld [vmem:[#allocation5 + $0x14] sm:$0xf]
        %v231 = vld [vmem:[#allocation5 + $0x18] sm:$0xff]
        %v232 = vld [vmem:[#allocation5 + $0x20] sm:$0xf]
        %v233 = vld [vmem:[#allocation5 + $0x24] sm:$0xff]
        %v234 = vld [vmem:[#allocation5 + $0x2c] sm:$0xf]
        %v235 = vld [vmem:[#allocation5 + $0x30] sm:$0xff]
        %v236 = vld [vmem:[#allocation5 + $0x38] sm:$0xf]
        %v237 = vld [vmem:[#allocation5 + $0x3c] sm:$0xff]
        %v238 = vld [vmem:[#allocation5 + $0x44] sm:$0xf]
        %v239 = vld [vmem:[#allocation5 + $0x48] sm:$0xff]
        %v240 = vld [vmem:[#allocation5 + $0x50] sm:$0xf]
        %v241 = vld [vmem:[#allocation5 + $0x54] sm:$0xff]
        %v242 = vld [vmem:[#allocation5 + $0x5c] sm:$0xf]
        %v243 = vld [vmem:[#allocation5 + $0x60] sm:$0xff]
        %v244 = vld [vmem:[#allocation5 + $0x68] sm:$0xf]
        %v245 = vld [vmem:[#allocation5 + $0x6c] sm:$0xff]
        %v246 = vld [vmem:[#allocation5 + $0x74] sm:$0xf]
        %v247 = vld [vmem:[#allocation5 + $0x78] sm:$0xff]
        %v248 = vld [vmem:[#allocation5 + $0x80] sm:$0xf]
        %v249 = vld [vmem:[#allocation5 + $0x84] sm:$0xff]
        %v250 = vld [vmem:[#allocation5 + $0x8c] sm:$0xf]
        %v251 = vld [vmem:[#allocation5 + $0x90] sm:$0xff]
        %v252 = vld [vmem:[#allocation5 + $0x98] sm:$0xf]
        %v253 = vld [vmem:[#allocation5 + $0x9c] sm:$0xff]
        %v254 = vld [vmem:[#allocation5 + $0xa4] sm:$0xf]
        %v255 = vld [vmem:[#allocation5 + $0xa8] sm:$0xff]
        %v256 = vld [vmem:[#allocation5 + $0xb0] sm:$0xf]
        %v257 = vld [vmem:[#allocation5 + $0xb4] sm:$0xff]
        %v258 = vld [vmem:[#allocation5 + $0xbc] sm:$0xf]
        %v291 = vunpack.c.l.b16 %v227
        %v292 = vunpack.c.h.b16 %v227
        %v293 = vunpack.c.l.b16 %v228
        %v294 = vunpack.c.l.b16 %v229
        %v295 = vunpack.c.h.b16 %v229
        %v296 = vunpack.c.l.b16 %v230
        %v297 = vunpack.c.l.b16 %v231
        %v298 = vunpack.c.h.b16 %v231
        %v299 = vunpack.c.l.b16 %v232
        %v300 = vunpack.c.l.b16 %v233
        %v301 = vunpack.c.h.b16 %v233
        %v302 = vunpack.c.l.b16 %v234
        %v303 = vunpack.c.l.b16 %v235
        %v304 = vunpack.c.h.b16 %v235
        %v305 = vunpack.c.l.b16 %v236
        %v306 = vunpack.c.l.b16 %v237
        %v307 = vunpack.c.h.b16 %v237
        %v308 = vunpack.c.l.b16 %v238
        %v309 = vunpack.c.l.b16 %v239
        %v310 = vunpack.c.h.b16 %v239
        %v311 = vunpack.c.l.b16 %v240
        %v312 = vunpack.c.l.b16 %v241
        %v313 = vunpack.c.h.b16 %v241
        %v314 = vunpack.c.l.b16 %v242
        %v315 = vunpack.c.l.b16 %v243
        %v316 = vunpack.c.h.b16 %v243
        %v317 = vunpack.c.l.b16 %v244
        %v318 = vunpack.c.l.b16 %v245
        %v319 = vunpack.c.h.b16 %v245
        %v320 = vunpack.c.l.b16 %v246
        %v321 = vunpack.c.l.b16 %v247
        %v322 = vunpack.c.h.b16 %v247
        %v323 = vunpack.c.l.b16 %v248
        %v324 = vunpack.c.l.b16 %v249
        %v325 = vunpack.c.h.b16 %v249
        %v326 = vunpack.c.l.b16 %v250
        %v327 = vunpack.c.l.b16 %v251
        %v328 = vunpack.c.h.b16 %v251
        %v329 = vunpack.c.l.b16 %v252
        %v330 = vunpack.c.l.b16 %v253
        %v331 = vunpack.c.h.b16 %v253
        %v332 = vunpack.c.l.b16 %v254
        %v333 = vunpack.c.l.b16 %v255
        %v334 = vunpack.c.h.b16 %v255
        %v335 = vunpack.c.l.b16 %v256
        %v336 = vunpack.c.l.b16 %v257
        %v337 = vunpack.c.h.b16 %v257
        %v338 = vunpack.c.l.b16 %v258
        %v339 = vpack.c.b16 %v294, %v291
        %v340 = vpack.c.b16 %v295, %v292
        %v341 = vpack.c.b16 %v296, %v293
        %v342 = vpack.c.b16 %v300, %v297
        %v343 = vpack.c.b16 %v301, %v298
        %v344 = vpack.c.b16 %v302, %v299
        %v345 = vpack.c.b16 %v306, %v303
        %v346 = vpack.c.b16 %v307, %v304
        %v347 = vpack.c.b16 %v308, %v305
        %v348 = vpack.c.b16 %v312, %v309
        %v349 = vpack.c.b16 %v313, %v310
        %v350 = vpack.c.b16 %v314, %v311
        %v351 = vpack.c.b16 %v318, %v315
        %v352 = vpack.c.b16 %v319, %v316
        %v353 = vpack.c.b16 %v320, %v317
        %v354 = vpack.c.b16 %v324, %v321
        %v355 = vpack.c.b16 %v325, %v322
        %v356 = vpack.c.b16 %v326, %v323
        %v357 = vpack.c.b16 %v330, %v327
        %v358 = vpack.c.b16 %v331, %v328
        %v359 = vpack.c.b16 %v332, %v329
        %v360 = vpack.c.b16 %v336, %v333
        %v361 = vpack.c.b16 %v337, %v334
        %v362 = vpack.c.b16 %v338, %v335
        %387 = vmatprep.subr.bf16.mxu0 %v340
        %388 = vmatpush1.bf16.msra.mxu0 %v339
        %389 = vmatprep.subr.bf16.mxu0 %v343
        %390 = vmatpush1.bf16.msra.mxu0 %v342
        %391 = vmatprep.subr.bf16.mxu0 %v346
        %392 = vmatpush1.bf16.msra.mxu0 %v345
        %393 = vmatprep.subr.bf16.mxu0 %v349
        %394 = vmatpush1.bf16.msra.mxu0 %v348
        %395 = vmatprep.subr.bf16.mxu0 %v352
        %396 = vmatpush1.bf16.msra.mxu0 %v351
        %397 = vmatprep.subr.bf16.mxu0 %v355
        %398 = vmatpush1.bf16.msra.mxu0 %v354
        %399 = vmatprep.subr.bf16.mxu0 %v358
        %400 = vmatpush1.bf16.msra.mxu0 %v357
        %401 = vmatprep.subr.bf16.mxu0 %v361
        %402 = vmatpush1.bf16.msra.mxu0 %v360
        %403 = vmatprep.subr.bf16.mxu0 0
        %404 = vmatpush1.bf16.msra.mxu0 0
        %405 = vmatprep.subr.bf16.mxu0 0
        %406 = vmatpush1.bf16.msra.mxu0 0
        %407 = vmatprep.subr.bf16.mxu0 0
        %408 = vmatpush1.bf16.msra.mxu0 0
        %409 = vmatprep.subr.bf16.mxu0 0
        %410 = vmatpush1.bf16.msra.mxu0 0
        %411 = vmatprep.subr.bf16.mxu0 0
        %412 = vmatpush1.bf16.msra.mxu0 0
        %413 = vmatprep.subr.bf16.mxu0 0
        %414 = vmatpush1.bf16.msra.mxu0 0
        %415 = vmatprep.subr.bf16.mxu0 0
        %416 = vmatpush1.bf16.msra.mxu0 0
        %417 = vmatprep.subr.bf16.mxu0 0
        %418 = vmatpush1.bf16.msra.mxu0 0
        %419 = vmatprep.mubr.bf16.mxu0 0
        %420 = vmatmul.mubr.bf16.gmra.mrb[0].mxu0 %v225
        %v421 = vpop.f32.mrb[0].mxu0
        %v422 = vadd.f32 0.0, %v421
        %v423 = vpop.f32.mrb[0].mxu0
        %v424 = vadd.f32 0.0, %v423
        %v425 = vpop.f32.mrb[0].mxu0
        %v426 = vadd.f32 0.0, %v425
        %v427 = vpop.f32.mrb[0].mxu0
        %v428 = vadd.f32 0.0, %v427
        %429 = vmatprep.mubr.bf16.mxu0 0
        %430 = vmatmul.mubr.bf16.gmra.mrb[0].mxu0 %v226
        %v431 = vpop.f32.mrb[0].mxu0
        %v432 = vadd.f32 0.0, %v431
        %v433 = vpop.f32.mrb[0].mxu0
        %v434 = vadd.f32 0.0, %v433
        %v435 = vpop.f32.mrb[0].mxu0
        %v436 = vadd.f32 0.0, %v435
        %v437 = vpop.f32.mrb[0].mxu0
        %v438 = vadd.f32 0.0, %v437
        %439 = vdwg.mxu0
        %440 = vmatprep.subr.bf16.mxu0 0
        %441 = vmatpush1.bf16.msra.mxu0 %v341
        %442 = vmatprep.subr.bf16.mxu0 0
        %443 = vmatpush1.bf16.msra.mxu0 %v344
        %444 = vmatprep.subr.bf16.mxu0 0
        %445 = vmatpush1.bf16.msra.mxu0 %v347
        %446 = vmatprep.subr.bf16.mxu0 0
        %447 = vmatpush1.bf16.msra.mxu0 %v350
        %448 = vmatprep.subr.bf16.mxu0 0
        %449 = vmatpush1.bf16.msra.mxu0 %v353
        %450 = vmatprep.subr.bf16.mxu0 0
        %451 = vmatpush1.bf16.msra.mxu0 %v356
        %452 = vmatprep.subr.bf16.mxu0 0
        %453 = vmatpush1.bf16.msra.mxu0 %v359
        %454 = vmatprep.subr.bf16.mxu0 0
        %455 = vmatpush1.bf16.msra.mxu0 %v362
        %456 = vmatprep.subr.bf16.mxu0 0
        %457 = vmatpush1.bf16.msra.mxu0 0
        %458 = vmatprep.subr.bf16.mxu0 0
        %459 = vmatpush1.bf16.msra.mxu0 0
        %460 = vmatprep.subr.bf16.mxu0 0
        %461 = vmatpush1.bf16.msra.mxu0 0
        %462 = vmatprep.subr.bf16.mxu0 0
        %463 = vmatpush1.bf16.msra.mxu0 0
        %464 = vmatprep.subr.bf16.mxu0 0
        %465 = vmatpush1.bf16.msra.mxu0 0
        %466 = vmatprep.subr.bf16.mxu0 0
        %467 = vmatpush1.bf16.msra.mxu0 0
        %468 = vmatprep.subr.bf16.mxu0 0
        %469 = vmatpush1.bf16.msra.mxu0 0
        %470 = vmatprep.subr.bf16.mxu0 0
        %471 = vmatpush1.bf16.msra.mxu0 0
        %472 = vmatprep.mubr.bf16.mxu0 0
        %473 = vmatmul.mubr.bf16.gmra.mrb[0].mxu0 %v225
        %v474 = vpop.f32.mrb[0].mxu0
        %v475 = vadd.f32 0.0, %v474
        %v476 = vpop.f32.mrb[0].mxu0
        %v477 = vpop.f32.mrb[0].mxu0
        %v478 = vadd.f32 0.0, %v477
        %v479 = vpop.f32.mrb[0].mxu0
        %480 = vmatprep.mubr.bf16.mxu0 0
        %481 = vmatmul.mubr.bf16.gmra.mrb[0].mxu0 %v226
        %v482 = vpop.f32.mrb[0].mxu0
        %v483 = vadd.f32 0.0, %v482
        %v484 = vpop.f32.mrb[0].mxu0
        %v485 = vpop.f32.mrb[0].mxu0
        %v486 = vadd.f32 0.0, %v485
        %v487 = vpop.f32.mrb[0].mxu0
        %488 = vdwg.mxu0
        %v489 = vxor.u32 %v422, 2147483648
        %v490 = vxor.u32 %v424, 2147483648
        %v491 = vxor.u32 %v475, 2147483648
        %v492 = vxor.u32 %v426, 2147483648
        %v493 = vxor.u32 %v428, 2147483648
        %v494 = vxor.u32 %v478, 2147483648
        %v495 = vxor.u32 %v432, 2147483648
        %v496 = vxor.u32 %v434, 2147483648
        %v497 = vxor.u32 %v483, 2147483648
        %v498 = vxor.u32 %v436, 2147483648
        %v499 = vxor.u32 %v438, 2147483648
        %v500 = vxor.u32 %v486, 2147483648
        %v501 = vmul.f32 %v489, 1.442695
        %v502 = vpow.pop %v501
        %v503 = vmul.f32 %v490, 1.442695
        %v504 = vpow.pop %v503
        %v505 = vmul.f32 %v491, 1.442695
        %v506 = vpow.pop %v505
        %v507 = vmul.f32 %v492, 1.442695
        %v508 = vpow.pop %v507
        %v509 = vmul.f32 %v493, 1.442695
        %v510 = vpow.pop %v509
        %v511 = vmul.f32 %v494, 1.442695
        %v512 = vpow.pop %v511
        %v513 = vmul.f32 %v495, 1.442695
        %v514 = vpow.pop %v513
        %v515 = vmul.f32 %v496, 1.442695
        %v516 = vpow.pop %v515
        %v517 = vmul.f32 %v497, 1.442695
        %v518 = vpow.pop %v517
        %v519 = vmul.f32 %v498, 1.442695
        %v520 = vpow.pop %v519
        %v521 = vmul.f32 %v499, 1.442695
        %v522 = vpow.pop %v521
        %v523 = vmul.f32 %v500, 1.442695
        %v524 = vpow.pop %v523
        %v525 = vadd.f32 %v502, 1.0
        %v526 = vadd.f32 %v504, 1.0
        %v527 = vadd.f32 %v506, 1.0
        %v528 = vadd.f32 %v508, 1.0
        %v529 = vadd.f32 %v510, 1.0
        %v530 = vadd.f32 %v512, 1.0
        %v531 = vadd.f32 %v514, 1.0
        %v532 = vadd.f32 %v516, 1.0
        %v533 = vadd.f32 %v518, 1.0
        %v534 = vadd.f32 %v520, 1.0
        %v535 = vadd.f32 %v522, 1.0
        %v536 = vadd.f32 %v524, 1.0
        %v537 = vrcp.pop %v525
        %v538 = vmul.f32 1.0, %v537
        %v539 = vrcp.pop %v526
        %v540 = vmul.f32 1.0, %v539
        %v541 = vrcp.pop %v527
        %v542 = vmul.f32 1.0, %v541
        %v543 = vrcp.pop %v528
        %v544 = vmul.f32 1.0, %v543
        %v545 = vrcp.pop %v529
        %v546 = vmul.f32 1.0, %v545
        %v547 = vrcp.pop %v530
        %v548 = vmul.f32 1.0, %v547
        %v549 = vrcp.pop %v531
        %v550 = vmul.f32 1.0, %v549
        %v551 = vrcp.pop %v532
        %v552 = vmul.f32 1.0, %v551
        %v553 = vrcp.pop %v533
        %v554 = vmul.f32 1.0, %v553
        %v555 = vrcp.pop %v534
        %v556 = vmul.f32 1.0, %v555
        %v557 = vrcp.pop %v535
        %v558 = vmul.f32 1.0, %v557
        %v559 = vrcp.pop %v536
        %v560 = vmul.f32 1.0, %v559
        %v561 = vmul.f32 %v221, %v538
        %v562 = vmul.f32 %v221, %v540
        %v563 = vmul.f32 %v221, %v542
        %v564 = vmul.f32 %v222, %v544
        %v565 = vmul.f32 %v222, %v546
        %v566 = vmul.f32 %v222, %v548
        %v567 = vmul.f32 %v223, %v550
        %v568 = vmul.f32 %v223, %v552
        %v569 = vmul.f32 %v223, %v554
        %v570 = vmul.f32 %v224, %v556
        %v571 = vmul.f32 %v224, %v558
        %v572 = vmul.f32 %v224, %v560
        %v573 = vpack.c.bf16 %v564, %v561
        %v574 = vpack.c.bf16 %v565, %v562
        %v575 = vpack.c.bf16 %v566, %v563
        %v576 = vpack.c.bf16 %v570, %v567
        %v577 = vpack.c.bf16 %v571, %v568
        %v578 = vpack.c.bf16 %v572, %v569
        %v579 = vld [vmem:[#allocation7] sm:$0xf]
        %v580 = vld [vmem:[#allocation7 + $0x4] sm:$0xf]
        %v581 = vld [vmem:[#allocation7 + $0x8] sm:$0xf]
        %v582 = vld [vmem:[#allocation7 + $0xc] sm:$0xf]
        %v583 = vld [vmem:[#allocation7 + $0x10] sm:$0xf]
        %v584 = vld [vmem:[#allocation7 + $0x14] sm:$0xf]
        %v585 = vld [vmem:[#allocation7 + $0x18] sm:$0xf]
        %v586 = vld [vmem:[#allocation7 + $0x1c] sm:$0xf]
        %v587 = vld [vmem:[#allocation7 + $0x20] sm:$0xf]
        %v588 = vld [vmem:[#allocation7 + $0x24] sm:$0xf]
        %v589 = vld [vmem:[#allocation7 + $0x28] sm:$0xf]
        %v590 = vld [vmem:[#allocation7 + $0x2c] sm:$0xf]
        %v591 = vld [vmem:[#allocation7 + $0x30] sm:$0xf]
        %v592 = vld [vmem:[#allocation7 + $0x34] sm:$0xf]
        %v593 = vld [vmem:[#allocation7 + $0x38] sm:$0xf]
        %v594 = vld [vmem:[#allocation7 + $0x3c] sm:$0xf]
        %v595 = vld [vmem:[#allocation7 + $0x40] sm:$0xf]
        %v596 = vld [vmem:[#allocation7 + $0x44] sm:$0xf]
        %v597 = vld [vmem:[#allocation7 + $0x48] sm:$0xf]
        %v598 = vld [vmem:[#allocation7 + $0x4c] sm:$0xf]
        %v599 = vld [vmem:[#allocation7 + $0x50] sm:$0xf]
        %v600 = vld [vmem:[#allocation7 + $0x54] sm:$0xf]
        %v601 = vld [vmem:[#allocation7 + $0x58] sm:$0xf]
        %v602 = vld [vmem:[#allocation7 + $0x5c] sm:$0xf]
        %v603 = vld [vmem:[#allocation7 + $0x60] sm:$0xf]
        %v604 = vld [vmem:[#allocation7 + $0x64] sm:$0xf]
        %v605 = vld [vmem:[#allocation7 + $0x68] sm:$0xf]
        %v606 = vld [vmem:[#allocation7 + $0x6c] sm:$0xf]
        %v607 = vld [vmem:[#allocation7 + $0x70] sm:$0xf]
        %v608 = vld [vmem:[#allocation7 + $0x74] sm:$0xf]
        %v609 = vld [vmem:[#allocation7 + $0x78] sm:$0xf]
        %v610 = vld [vmem:[#allocation7 + $0x7c] sm:$0xf]
        %v611 = vld [vmem:[#allocation7 + $0x80] sm:$0xf]
        %v612 = vld [vmem:[#allocation7 + $0x84] sm:$0xf]
        %v613 = vld [vmem:[#allocation7 + $0x88] sm:$0xf]
        %v614 = vld [vmem:[#allocation7 + $0x8c] sm:$0xf]
        %v615 = vld [vmem:[#allocation7 + $0x90] sm:$0xf]
        %v616 = vld [vmem:[#allocation7 + $0x94] sm:$0xf]
        %v617 = vld [vmem:[#allocation7 + $0x98] sm:$0xf]
        %v618 = vld [vmem:[#allocation7 + $0x9c] sm:$0xf]
        %v619 = vld [vmem:[#allocation7 + $0xa0] sm:$0xf]
        %v620 = vld [vmem:[#allocation7 + $0xa4] sm:$0xf]
        %v621 = vld [vmem:[#allocation7 + $0xa8] sm:$0xf]
        %v622 = vld [vmem:[#allocation7 + $0xac] sm:$0xf]
        %v623 = vld [vmem:[#allocation7 + $0xb0] sm:$0xf]
        %v624 = vld [vmem:[#allocation7 + $0xb4] sm:$0xf]
        %v625 = vld [vmem:[#allocation7 + $0xb8] sm:$0xf]
        %v626 = vld [vmem:[#allocation7 + $0xbc] sm:$0xf]
        %v675 = vunpack.c.l.b16 %v579
        %v676 = vunpack.c.l.b16 %v580
        %v677 = vunpack.c.l.b16 %v581
        %v678 = vunpack.c.l.b16 %v582
        %v679 = vunpack.c.l.b16 %v583
        %v680 = vunpack.c.l.b16 %v584
        %v681 = vunpack.c.l.b16 %v585
        %v682 = vunpack.c.l.b16 %v586
        %v683 = vunpack.c.l.b16 %v587
        %v684 = vunpack.c.l.b16 %v588
        %v685 = vunpack.c.l.b16 %v589
        %v686 = vunpack.c.l.b16 %v590
        %v687 = vunpack.c.l.b16 %v591
        %v688 = vunpack.c.l.b16 %v592
        %v689 = vunpack.c.l.b16 %v593
        %v690 = vunpack.c.l.b16 %v594
        %v691 = vunpack.c.l.b16 %v595
        %v692 = vunpack.c.l.b16 %v596
        %v693 = vunpack.c.l.b16 %v597
        %v694 = vunpack.c.l.b16 %v598
        %v695 = vunpack.c.l.b16 %v599
        %v696 = vunpack.c.l.b16 %v600
        %v697 = vunpack.c.l.b16 %v601
        %v698 = vunpack.c.l.b16 %v602
        %v699 = vunpack.c.l.b16 %v603
        %v700 = vunpack.c.l.b16 %v604
        %v701 = vunpack.c.l.b16 %v605
        %v702 = vunpack.c.l.b16 %v606
        %v703 = vunpack.c.l.b16 %v607
        %v704 = vunpack.c.l.b16 %v608
        %v705 = vunpack.c.l.b16 %v609
        %v706 = vunpack.c.l.b16 %v610
        %v707 = vunpack.c.l.b16 %v611
        %v708 = vunpack.c.l.b16 %v612
        %v709 = vunpack.c.l.b16 %v613
        %v710 = vunpack.c.l.b16 %v614
        %v711 = vunpack.c.l.b16 %v615
        %v712 = vunpack.c.l.b16 %v616
        %v713 = vunpack.c.l.b16 %v617
        %v714 = vunpack.c.l.b16 %v618
        %v715 = vunpack.c.l.b16 %v619
        %v716 = vunpack.c.l.b16 %v620
        %v717 = vunpack.c.l.b16 %v621
        %v718 = vunpack.c.l.b16 %v622
        %v719 = vunpack.c.l.b16 %v623
        %v720 = vunpack.c.l.b16 %v624
        %v721 = vunpack.c.l.b16 %v625
        %v722 = vunpack.c.l.b16 %v626
        %v723 = vpack.c.b16 %v676, %v675
        %v724 = vpack.c.b16 %v678, %v677
        %v725 = vpack.c.b16 %v680, %v679
        %v726 = vpack.c.b16 %v682, %v681
        %v727 = vpack.c.b16 %v684, %v683
        %v728 = vpack.c.b16 %v686, %v685
        %v729 = vpack.c.b16 %v688, %v687
        %v730 = vpack.c.b16 %v690, %v689
        %v731 = vpack.c.b16 %v692, %v691
        %v732 = vpack.c.b16 %v694, %v693
        %v733 = vpack.c.b16 %v696, %v695
        %v734 = vpack.c.b16 %v698, %v697
        %v735 = vpack.c.b16 %v700, %v699
        %v736 = vpack.c.b16 %v702, %v701
        %v737 = vpack.c.b16 %v704, %v703
        %v738 = vpack.c.b16 %v706, %v705
        %v739 = vpack.c.b16 %v708, %v707
        %v740 = vpack.c.b16 %v710, %v709
        %v741 = vpack.c.b16 %v712, %v711
        %v742 = vpack.c.b16 %v714, %v713
        %v743 = vpack.c.b16 %v716, %v715
        %v744 = vpack.c.b16 %v718, %v717
        %v745 = vpack.c.b16 %v720, %v719
        %v746 = vpack.c.b16 %v722, %v721
        %771 = vmatprep.subr.bf16.mxu0 0
        %772 = vmatpush1.bf16.msra.mxu0 %v723
        %773 = vmatprep.subr.bf16.mxu0 0
        %774 = vmatpush1.bf16.msra.mxu0 %v724
        %775 = vmatprep.subr.bf16.mxu0 0
        %776 = vmatpush1.bf16.msra.mxu0 %v725
        %777 = vmatprep.subr.bf16.mxu0 0
        %778 = vmatpush1.bf16.msra.mxu0 %v726
        %779 = vmatprep.subr.bf16.mxu0 0
        %780 = vmatpush1.bf16.msra.mxu0 %v727
        %781 = vmatprep.subr.bf16.mxu0 0
        %782 = vmatpush1.bf16.msra.mxu0 %v728
        %783 = vmatprep.subr.bf16.mxu0 0
        %784 = vmatpush1.bf16.msra.mxu0 %v729
        %785 = vmatprep.subr.bf16.mxu0 0
        %786 = vmatpush1.bf16.msra.mxu0 %v730
        %787 = vmatprep.subr.bf16.mxu0 0
        %788 = vmatpush1.bf16.msra.mxu0 %v731
        %789 = vmatprep.subr.bf16.mxu0 0
        %790 = vmatpush1.bf16.msra.mxu0 %v732
        %791 = vmatprep.subr.bf16.mxu0 0
        %792 = vmatpush1.bf16.msra.mxu0 %v733
        %793 = vmatprep.subr.bf16.mxu0 0
        %794 = vmatpush1.bf16.msra.mxu0 %v734
        %795 = vmatprep.subr.bf16.mxu0 0
        %796 = vmatpush1.bf16.msra.mxu0 %v735
        %797 = vmatprep.subr.bf16.mxu0 0
        %798 = vmatpush1.bf16.msra.mxu0 %v736
        %799 = vmatprep.subr.bf16.mxu0 0
        %800 = vmatpush1.bf16.msra.mxu0 %v737
        %801 = vmatprep.subr.bf16.mxu0 0
        %802 = vmatpush1.bf16.msra.mxu0 %v738
        %803 = vmatprep.mubr.bf16.mxu0 %v574
        %804 = vmatmul.mubr.bf16.gmra.mrb[0].mxu0 %v573
        %v805 = vpop.f32.mrb[0].mxu0
        %v806 = vadd.f32 0.0, %v805
        %v807 = vpop.f32.mrb[0].mxu0
        %v808 = vpop.f32.mrb[0].mxu0
        %v809 = vadd.f32 0.0, %v808
        %v810 = vpop.f32.mrb[0].mxu0
        %811 = vmatprep.mubr.bf16.mxu0 %v577
        %812 = vmatmul.mubr.bf16.gmra.mrb[0].mxu0 %v576
        %v813 = vpop.f32.mrb[0].mxu0
        %v814 = vadd.f32 0.0, %v813
        %v815 = vpop.f32.mrb[0].mxu0
        %v816 = vpop.f32.mrb[0].mxu0
        %v817 = vadd.f32 0.0, %v816
        %v818 = vpop.f32.mrb[0].mxu0
        %819 = vdwg.mxu0
        %820 = vmatprep.subr.bf16.mxu0 0
        %821 = vmatpush1.bf16.msra.mxu0 %v739
        %822 = vmatprep.subr.bf16.mxu0 0
        %823 = vmatpush1.bf16.msra.mxu0 %v740
        %824 = vmatprep.subr.bf16.mxu0 0
        %825 = vmatpush1.bf16.msra.mxu0 %v741
        %826 = vmatprep.subr.bf16.mxu0 0
        %827 = vmatpush1.bf16.msra.mxu0 %v742
        %828 = vmatprep.subr.bf16.mxu0 0
        %829 = vmatpush1.bf16.msra.mxu0 %v743
        %830 = vmatprep.subr.bf16.mxu0 0
        %831 = vmatpush1.bf16.msra.mxu0 %v744
        %832 = vmatprep.subr.bf16.mxu0 0
        %833 = vmatpush1.bf16.msra.mxu0 %v745
        %834 = vmatprep.subr.bf16.mxu0 0
        %835 = vmatpush1.bf16.msra.mxu0 %v746
        %836 = vmatprep.subr.bf16.mxu0 0
        %837 = vmatpush1.bf16.msra.mxu0 0
        %838 = vmatprep.subr.bf16.mxu0 0
        %839 = vmatpush1.bf16.msra.mxu0 0
        %840 = vmatprep.subr.bf16.mxu0 0
        %841 = vmatpush1.bf16.msra.mxu0 0
        %842 = vmatprep.subr.bf16.mxu0 0
        %843 = vmatpush1.bf16.msra.mxu0 0
        %844 = vmatprep.subr.bf16.mxu0 0
        %845 = vmatpush1.bf16.msra.mxu0 0
        %846 = vmatprep.subr.bf16.mxu0 0
        %847 = vmatpush1.bf16.msra.mxu0 0
        %848 = vmatprep.subr.bf16.mxu0 0
        %849 = vmatpush1.bf16.msra.mxu0 0
        %850 = vmatprep.subr.bf16.mxu0 0
        %851 = vmatpush1.bf16.msra.mxu0 0
        %852 = vmatprep.mubr.bf16.mxu0 0
        %853 = vmatmul.mubr.bf16.gmra.mrb[0].mxu0 %v575
        %v854 = vpop.f32.mrb[0].mxu0
        %v855 = vadd.f32 %v806, %v854
        %v856 = vpop.f32.mrb[0].mxu0
        %v857 = vpop.f32.mrb[0].mxu0
        %v858 = vadd.f32 %v809, %v857
        %v859 = vpop.f32.mrb[0].mxu0
        %860 = vmatprep.mubr.bf16.mxu0 0
        %861 = vmatmul.mubr.bf16.gmra.mrb[0].mxu0 %v578
        %v862 = vpop.f32.mrb[0].mxu0
        %v863 = vadd.f32 %v814, %v862
        %v864 = vpop.f32.mrb[0].mxu0
        %v865 = vpop.f32.mrb[0].mxu0
        %v866 = vadd.f32 %v817, %v865
        %v867 = vpop.f32.mrb[0].mxu0
        %868 = vdwg.mxu0
        %869 = vst [vmem:[%s217] sm:$0xff] %v855
        %870 = vst [vmem:[%s217 + $0x8] sm:$0xff] %v858
        %871 = vst [vmem:[%s217 + $0x10] sm:$0xff] %v863
        %872 = vst [vmem:[%s217 + $0x18] sm:$0xff] %v866
        %s873 = sand.u32 %s97, 1
        %s874 = scalar_lea.sflag [#allocation4], %s873
        %s875 = sand.u32 %s97, 1
        %s876 = smul.addr %s875, 32
        %s877 = scalar_lea.vmem [#allocation8], %s876
        // Predicated region
        $region45: #{tpu_custom_call.1} parent=31 // pred_check
          %p878 = pneg %p107
        $region46: #{tpu_custom_call.1} parent=31 // pred_check_branch
          %880 = sbr.rel (%p878) target = $region48
        $region47: #{tpu_custom_call.1} parent=31 // pred_region
          %s881 = smul.u32 4, %s21
          %s883 = ssub.s32 512, 512
          %884 = vsyncadd %s874, %s883
          %s885 = smul.addr %s881, 128
          %s886 = scalar_lea.hbm %s3, %s885
          %s887 = sshll.u32 %s877, 4
          %s888 = int_to_ptr.vmem [resolvable:$true] %s887
          %893 = dma.vmem_to_hbm [thread:$0]  %s888, 512, %s886, %s874, 128, 128, 8
        $region48: #{tpu_custom_call.1} parent=31 // pred_fallthru
          _
      $region32: #{tpu_custom_call.1} parent=5 // pred_fallthru
        _
      %p894 = scmp.le.s32.totalorder 2, %s16
      // Predicated region
      $region49: #{tpu_custom_call.1} parent=5 // pred_check
        %p895 = pneg %p894
      $region50: #{tpu_custom_call.1} parent=5 // pred_check_branch
        %897 = sbr.rel (%p895) target = $region52
      $region51: #{tpu_custom_call.1} parent=5 // pred_region
        %s898 = ssub.s32 %s16, 2
        // Predicated region
        $region53: #{tpu_custom_call.1} parent=51 // pred_check
          %p899 = pneg %p113
        $region54: #{tpu_custom_call.1} parent=51 // pred_check_branch
          %901 = sbr.rel (%p899) target = $region56
        $region55: #{tpu_custom_call.1} parent=51 // pred_region
          %s902 = sand.u32 %s98, 1
          %s903 = scalar_lea.sflag [#allocation4], %s902
          %s904 = sand.u32 %s98, 1
          %s905 = smul.addr %s904, 32
          %s906 = scalar_lea.vmem [#allocation8], %s905
          %907 = dma.done %s903, 512
        $region56: #{tpu_custom_call.1} parent=51 // pred_fallthru
          _
      $region52: #{tpu_custom_call.1} parent=5 // pred_fallthru
        _
    $region6: #{tpu_custom_call.1} parent=1 // loop_footer
      %s20 = sadd.s32 1, %s16
    $region7: #{tpu_custom_call.1} parent=1 // loop_footer_branch
      %15 = sbr.rel target = $region3
    $region8: #{tpu_custom_call.1} parent=1 // loop_exit
      _
    %908 = vsyncpa [#allocation3], 1
    %s909 = scalar_lea.sflag [#allocation3], 1
    %910 = vsyncpa %s909, 1
    %911 = vsyncpa [#allocation6], 1
    %912 = vsyncpa [#allocation4], 1
    %s913 = scalar_lea.sflag [#allocation4], 1
    %914 = vsyncpa %s913, 1

</llo_original>
